<compile_context>
chip_gen: v7x
topology: tpu7x:2x2x1
jax: 0.10.0
libtpu: 0.0.40
codegen_flags: <defaults>
</compile_context>

<pallas_src>
import functools

import jax
import jax.numpy as jnp
from jax.experimental import pallas as pl
from jax.experimental.pallas import tpu as pltpu


_NEG_LARGE = -1e30  # finite "-inf" so first-tile rescale terms are 0 * finite, never 0 * inf


def rcm_loss_kernel(temp_ref, tgt_ref, out_ref,
                    m_s, l_s, m_t, z_t, acc,
                    *, inv_temper, n_target, inv_batch):
    # temp_ref: (1, B, Dt)            student logits, layer i, D-tile d
    # tgt_ref : (n_target, 1, B, Dt)  teacher logits, layer L - n_temp + i, D-tile d
    # out_ref : (1, 8, 128)           lane-dense per-layer loss (broadcast scalar)
    # m_s,l_s : student running max / sumexp, (B, 1)
    # m_t,z_t : teacher running max / sumexp, (B, 1)
    # acc     : running sum_D exp(tw - m_t) * (s - m_s), (B, 1)
    d = pl.program_id(1)
    n_d = pl.num_programs(1)

    @pl.when(d == 0)
    def _init():
        m_s[...] = jnp.full_like(m_s, _NEG_LARGE)
        m_t[...] = jnp.full_like(m_t, _NEG_LARGE)
        l_s[...] = jnp.zeros_like(l_s)
        z_t[...] = jnp.zeros_like(z_t)
        acc[...] = jnp.zeros_like(acc)

    # Student logits tile, widened in-kernel (inputs may stay bf16 in HBM).
    s = temp_ref[0].astype(jnp.float32) * inv_temper                   # (B, Dt)

    # Teacher tile: accumulate across teachers without widening the whole block.
    t = tgt_ref[0, 0].astype(jnp.float32)
    for j in range(1, n_target):
        t = t + tgt_ref[j, 0].astype(jnp.float32)
    t = t * inv_temper                                                 # (B, Dt)

    # --- online-softmax running statistics --------------------------------
    m_s_new = jnp.maximum(m_s[...], jnp.max(s, axis=-1, keepdims=True))
    m_t_new = jnp.maximum(m_t[...], jnp.max(t, axis=-1, keepdims=True))
    alpha_s = jnp.exp(m_s[...] - m_s_new)
    alpha_t = jnp.exp(m_t[...] - m_t_new)

    p_s = jnp.exp(s - m_s_new)                                         # (B, Dt)
    p_t = jnp.exp(t - m_t_new)                                         # (B, Dt)

    z_t_old = alpha_t * z_t[...]                                       # rescaled previous teacher mass
    l_s[...] = alpha_s * l_s[...] + jnp.sum(p_s, axis=-1, keepdims=True)
    z_t[...] = z_t_old + jnp.sum(p_t, axis=-1, keepdims=True)

    # acc tracks sum_D exp(tw - m_t) * (s - m_s) w.r.t. the CURRENT maxes:
    # rescale old contributions for both max shifts, then add this tile.
    acc[...] = (alpha_t * acc[...]
                - (m_s_new - m_s[...]) * z_t_old
                + jnp.sum(p_t * (s - m_s_new), axis=-1, keepdims=True))

    m_s[...] = m_s_new
    m_t[...] = m_t_new

    @pl.when(d == n_d - 1)
    def _finalize():
        # per-row loss = -sum_D softmax(tw) * log_softmax(s)
        #              = log(sum_D exp(s - m_s)) - (1/z_t) * sum_D exp(tw - m_t) * (s - m_s)
        loss_rows = jnp.log(l_s[...]) - acc[...] * pl.reciprocal(z_t[...], approx=False)
        layer_loss = jnp.sum(loss_rows) * inv_batch                    # mean over batch
        out_ref[...] = layer_loss * jnp.ones(out_ref.shape, jnp.float32)


def _pick_d_tile(D, target):
    """Largest lane-dense (multiple of 128) tile <= target that divides D."""
    if D <= target or D % 128 != 0:
        return D
    for cand in range(min(target, D), 127, -128):
        if cand % 128 == 0 and D % cand == 0:
            return cand
    return D


def rcm_loss(temp_out, target_out, temper, *, d_tile=512, vmem_limit_bytes=None):
    """temp_out: (N_temp, B, D); target_out: (N_target, L, B, D). bf16/f32 logits OK."""
    n_temp, B, D = temp_out.shape
    n_target, L = target_out.shape[:2]
    assert L >= n_temp
    assert target_out.shape[2:] == (B, D)

    dt = _pick_d_tile(D, d_tile)
    n_d = D // dt

    kernel = functools.partial(
        rcm_loss_kernel,
        inv_temper=1.0 / float(temper),
        n_target=n_target,
        inv_batch=1.0 / float(B),
    )

    layer_losses = pl.pallas_call(
        kernel,
        out_shape=jax.ShapeDtypeStruct((n_temp, 8, 128), jnp.float32),
        grid_spec=pltpu.PrefetchScalarGridSpec(
            num_scalar_prefetch=0,
            grid=(n_temp, n_d),
            in_specs=[
                # student: layer i, D-tile d
                pl.BlockSpec((1, B, dt), lambda i, d: (i, 0, d)),
                # teacher: only layer L - n_temp + i is ever DMA'd (size-1 layer block
                # -> block index == element index, so no block-alignment issue).
                pl.BlockSpec((n_target, 1, B, dt),
                             lambda i, d: (0, L - n_temp + i, 0, d)),
            ],
            # lane-dense per-layer output block, written once on the last D step
            out_specs=pl.BlockSpec((1, 8, 128), lambda i, d: (i, 0, 0)),
            scratch_shapes=[pltpu.VMEM((B, 1), jnp.float32)] * 5,
        ),
        compiler_params=pltpu.CompilerParams(
            dimension_semantics=("parallel", "arbitrary"),
            vmem_limit_bytes=vmem_limit_bytes,
        ),
    )(temp_out, target_out)

    # Tiny epilogue in plain JAX: sum over layers / n_temp.
    return jnp.sum(layer_losses[:, 0, 0]) / n_temp


def rcm_loss_reference(temp_out, target_out, temper):
    """Pure-JAX reference mirroring the PyTorch forward (computed in f32)."""
    temp_out = temp_out.astype(jnp.float32)
    target_out = target_out.astype(jnp.float32)
    n_temp = temp_out.shape[0]
    loss = jnp.float32(0.0)
    for i in range(n_temp):
        tw = jnp.zeros_like(target_out[0, 0])
        for j in range(target_out.shape[0]):
            tw = tw + target_out[j, -(n_temp - i)]
        tw = jax.nn.softmax(tw / temper, axis=-1)
        lsm = jax.nn.log_softmax(temp_out[i] / temper, axis=-1)
        loss = loss + jnp.mean(jnp.sum(-tw * lsm, axis=-1))
    return loss / n_temp


if __name__ == "__main__":
    key = jax.random.PRNGKey(0)
    k_temp, k_tgt = jax.random.split(key)

    # Small shapes consistent with the forward: N_temp student layers of [B, D]
    # logits, N_target teacher models each producing L layers of [B, D] logits.
    # D = 256 with d_tile = 128 exercises the online-softmax D pipeline (2 tiles).
    N_TEMP, N_TARGET, L, B, D = 2, 3, 4, 8, 256
    TEMPER = 4.0  # self.args.temper (hyperparameter, set deterministically)

    # bf16 at the call boundary (memory-bound kernel); widened per-tile in-kernel.
    temp_out = jax.random.normal(k_temp, (N_TEMP, B, D)).astype(jnp.bfloat16)
    target_out = jax.random.normal(k_tgt, (N_TARGET, L, B, D)).astype(jnp.bfloat16)

    out = jax.block_until_ready(rcm_loss(temp_out, target_out, TEMPER, d_tile=128))
    ref = jax.block_until_ready(rcm_loss_reference(temp_out, target_out, TEMPER))

    assert jnp.allclose(out, ref, rtol=1e-5, atol=1e-5), (out, ref)
    print("KERNEL_OK")
</pallas_src>

<mosaic_0001>
module attributes {stable_mosaic.version = 11 : i64} {
  func.func @rcm_loss_kernel(%arg0: i32, %arg1: i32, %arg2: memref<1x8x128xbf16, #tpu.memory_space<vmem>>, %arg3: memref<3x1x8x128xbf16, #tpu.memory_space<vmem>>, %arg4: memref<1x8x128xf32, #tpu.memory_space<vmem>>, %arg5: memref<8x1xf32, #tpu.memory_space<vmem>>, %arg6: memref<8x1xf32, #tpu.memory_space<vmem>>, %arg7: memref<8x1xf32, #tpu.memory_space<vmem>>, %arg8: memref<8x1xf32, #tpu.memory_space<vmem>>, %arg9: memref<8x1xf32, #tpu.memory_space<vmem>>) attributes {dimension_semantics = [#tpu.dimension_semantics<parallel>, #tpu.dimension_semantics<arbitrary>], iteration_bounds = array<i64: 2, 2>, scalar_prefetch = 0 : i64, scratch_operands = 5 : i64, tpu.core_type = #tpu.core_type<tc>, window_params = [{transform_indices = @transform_0, window_bounds = array<i64: 1, 8, 128>}, {transform_indices = @transform_1, window_bounds = array<i64: 3, 1, 8, 128>}, {transform_indices = @transform_2, window_bounds = array<i64: 1, 8, 128>}]} {
    %c0_i32 = arith.constant 0 : i32
    %0 = arith.cmpi eq, %arg1, %c0_i32 : i32
    %1 = arith.extui %0 : i1 to i32
    %c0_i32_0 = arith.constant 0 : i32
    %2 = arith.cmpi ne, %1, %c0_i32_0 : i32
    scf.if %2 {
      %cst_46 = arith.constant -1.000000e+30 : f32
      %71 = vector.broadcast %cst_46 : f32 to vector<8x1xf32>
      %c0_47 = arith.constant 0 : index
      %c0_48 = arith.constant 0 : index
      %72 = vector.load %arg5[%c0_47, %c0_48] : memref<8x1xf32, #tpu.memory_space<vmem>>, vector<8x1xf32>
      tpu.vector_store %arg5[%c0_47, %c0_48], %71 {strides = array<i32>} : memref<8x1xf32, #tpu.memory_space<vmem>>, vector<8x1xf32>,
      %cst_49 = arith.constant -1.000000e+30 : f32
      %73 = vector.broadcast %cst_49 : f32 to vector<8x1xf32>
      %c0_50 = arith.constant 0 : index
      %c0_51 = arith.constant 0 : index
      %74 = vector.load %arg7[%c0_50, %c0_51] : memref<8x1xf32, #tpu.memory_space<vmem>>, vector<8x1xf32>
      tpu.vector_store %arg7[%c0_50, %c0_51], %73 {strides = array<i32>} : memref<8x1xf32, #tpu.memory_space<vmem>>, vector<8x1xf32>,
      %cst_52 = arith.constant 0.000000e+00 : f32
      %75 = vector.broadcast %cst_52 : f32 to vector<8x1xf32>
      %c0_53 = arith.constant 0 : index
      %c0_54 = arith.constant 0 : index
      %76 = vector.load %arg6[%c0_53, %c0_54] : memref<8x1xf32, #tpu.memory_space<vmem>>, vector<8x1xf32>
      tpu.vector_store %arg6[%c0_53, %c0_54], %75 {strides = array<i32>} : memref<8x1xf32, #tpu.memory_space<vmem>>, vector<8x1xf32>,
      %cst_55 = arith.constant 0.000000e+00 : f32
      %77 = vector.broadcast %cst_55 : f32 to vector<8x1xf32>
      %c0_56 = arith.constant 0 : index
      %c0_57 = arith.constant 0 : index
      %78 = vector.load %arg8[%c0_56, %c0_57] : memref<8x1xf32, #tpu.memory_space<vmem>>, vector<8x1xf32>
      tpu.vector_store %arg8[%c0_56, %c0_57], %77 {strides = array<i32>} : memref<8x1xf32, #tpu.memory_space<vmem>>, vector<8x1xf32>,
      %cst_58 = arith.constant 0.000000e+00 : f32
      %79 = vector.broadcast %cst_58 : f32 to vector<8x1xf32>
      %c0_59 = arith.constant 0 : index
      %c0_60 = arith.constant 0 : index
      %80 = vector.load %arg9[%c0_59, %c0_60] : memref<8x1xf32, #tpu.memory_space<vmem>>, vector<8x1xf32>
      tpu.vector_store %arg9[%c0_59, %c0_60], %79 {strides = array<i32>} : memref<8x1xf32, #tpu.memory_space<vmem>>, vector<8x1xf32>,
    } else {
    }
    %c0 = arith.constant 0 : index
    %c0_1 = arith.constant 0 : index
    %c0_2 = arith.constant 0 : index
    %3 = vector.load %arg2[%c0, %c0_1, %c0_2] : memref<1x8x128xbf16, #tpu.memory_space<vmem>>, vector<1x8x128xbf16>
    %4 = vector.shape_cast %3 : vector<1x8x128xbf16> to vector<8x128xbf16>
    %5 = arith.extf %4 : vector<8x128xbf16> to vector<8x128xf32>
    %cst = arith.constant 2.500000e-01 : f32
    %6 = vector.broadcast %cst : f32 to vector<8x128xf32>
    %7 = arith.mulf %5, %6 : vector<8x128xf32>
    %c0_3 = arith.constant 0 : index
    %c0_4 = arith.constant 0 : index
    %c0_5 = arith.constant 0 : index
    %c0_6 = arith.constant 0 : index
    %8 = vector.load %arg3[%c0_3, %c0_4, %c0_5, %c0_6] : memref<3x1x8x128xbf16, #tpu.memory_space<vmem>>, vector<1x1x8x128xbf16>
    %9 = vector.shape_cast %8 : vector<1x1x8x128xbf16> to vector<8x128xbf16>
    %10 = arith.extf %9 : vector<8x128xbf16> to vector<8x128xf32>
    %c1 = arith.constant 1 : index
    %c0_7 = arith.constant 0 : index
    %c0_8 = arith.constant 0 : index
    %c0_9 = arith.constant 0 : index
    %11 = vector.load %arg3[%c1, %c0_7, %c0_8, %c0_9] : memref<3x1x8x128xbf16, #tpu.memory_space<vmem>>, vector<1x1x8x128xbf16>
    %12 = vector.shape_cast %11 : vector<1x1x8x128xbf16> to vector<8x128xbf16>
    %13 = arith.extf %12 : vector<8x128xbf16> to vector<8x128xf32>
    %14 = arith.addf %10, %13 : vector<8x128xf32>
    %c2 = arith.constant 2 : index
    %c0_10 = arith.constant 0 : index
    %c0_11 = arith.constant 0 : index
    %c0_12 = arith.constant 0 : index
    %15 = vector.load %arg3[%c2, %c0_10, %c0_11, %c0_12] : memref<3x1x8x128xbf16, #tpu.memory_space<vmem>>, vector<1x1x8x128xbf16>
    %16 = vector.shape_cast %15 : vector<1x1x8x128xbf16> to vector<8x128xbf16>
    %17 = arith.extf %16 : vector<8x128xbf16> to vector<8x128xf32>
    %18 = arith.addf %14, %17 : vector<8x128xf32>
    %cst_13 = arith.constant 2.500000e-01 : f32
    %19 = vector.broadcast %cst_13 : f32 to vector<8x128xf32>
    %20 = arith.mulf %18, %19 : vector<8x128xf32>
    %c0_14 = arith.constant 0 : index
    %c0_15 = arith.constant 0 : index
    %21 = vector.load %arg5[%c0_14, %c0_15] : memref<8x1xf32, #tpu.memory_space<vmem>>, vector<8x1xf32>
    %cst_16 = arith.constant dense<0xFF800000> : vector<8xf32>
    %22 = vector.multi_reduction <maximumf>, %7, %cst_16 [1] : vector<8x128xf32> to vector<8xf32>
    %23 = vector.shape_cast %22 : vector<8xf32> to vector<8x1xf32>
    %24 = arith.maximumf %21, %23 : vector<8x1xf32>
    %c0_17 = arith.constant 0 : index
    %c0_18 = arith.constant 0 : index
    %25 = vector.load %arg7[%c0_17, %c0_18] : memref<8x1xf32, #tpu.memory_space<vmem>>, vector<8x1xf32>
    %cst_19 = arith.constant dense<0xFF800000> : vector<8xf32>
    %26 = vector.multi_reduction <maximumf>, %20, %cst_19 [1] : vector<8x128xf32> to vector<8xf32>
    %27 = vector.shape_cast %26 : vector<8xf32> to vector<8x1xf32>
    %28 = arith.maximumf %25, %27 : vector<8x1xf32>
    %c0_20 = arith.constant 0 : index
    %c0_21 = arith.constant 0 : index
    %29 = vector.load %arg5[%c0_20, %c0_21] : memref<8x1xf32, #tpu.memory_space<vmem>>, vector<8x1xf32>
    %30 = arith.subf %29, %24 : vector<8x1xf32>
    %31 = math.exp %30 : vector<8x1xf32>
    %c0_22 = arith.constant 0 : index
    %c0_23 = arith.constant 0 : index
    %32 = vector.load %arg7[%c0_22, %c0_23] : memref<8x1xf32, #tpu.memory_space<vmem>>, vector<8x1xf32>
    %33 = arith.subf %32, %28 : vector<8x1xf32>
    %34 = math.exp %33 : vector<8x1xf32>
    %35 = vector.broadcast %24 : vector<8x1xf32> to vector<8x128xf32>
    %36 = arith.subf %7, %35 : vector<8x128xf32>
    %37 = math.exp %36 : vector<8x128xf32>
    %38 = vector.broadcast %28 : vector<8x1xf32> to vector<8x128xf32>
    %39 = arith.subf %20, %38 : vector<8x128xf32>
    %40 = math.exp %39 : vector<8x128xf32>
    %c0_24 = arith.constant 0 : index
    %c0_25 = arith.constant 0 : index
    %41 = vector.load %arg8[%c0_24, %c0_25] : memref<8x1xf32, #tpu.memory_space<vmem>>, vector<8x1xf32>
    %42 = arith.mulf %34, %41 : vector<8x1xf32>
    %c0_26 = arith.constant 0 : index
    %c0_27 = arith.constant 0 : index
    %43 = vector.load %arg6[%c0_26, %c0_27] : memref<8x1xf32, #tpu.memory_space<vmem>>, vector<8x1xf32>
    %44 = arith.mulf %31, %43 : vector<8x1xf32>
    %cst_28 = arith.constant dense<0.000000e+00> : vector<8xf32>
    %45 = vector.multi_reduction <add>, %37, %cst_28 [1] : vector<8x128xf32> to vector<8xf32>
    %46 = vector.shape_cast %45 : vector<8xf32> to vector<8x1xf32>
    %47 = arith.addf %44, %46 : vector<8x1xf32>
    %c0_29 = arith.constant 0 : index
    %c0_30 = arith.constant 0 : index
    %48 = vector.load %arg6[%c0_29, %c0_30] : memref<8x1xf32, #tpu.memory_space<vmem>>, vector<8x1xf32>
    tpu.vector_store %arg6[%c0_29, %c0_30], %47 {strides = array<i32>} : memref<8x1xf32, #tpu.memory_space<vmem>>, vector<8x1xf32>,
    %cst_31 = arith.constant dense<0.000000e+00> : vector<8xf32>
    %49 = vector.multi_reduction <add>, %40, %cst_31 [1] : vector<8x128xf32> to vector<8xf32>
    %50 = vector.shape_cast %49 : vector<8xf32> to vector<8x1xf32>
    %51 = arith.addf %42, %50 : vector<8x1xf32>
    %c0_32 = arith.constant 0 : index
    %c0_33 = arith.constant 0 : index
    %52 = vector.load %arg8[%c0_32, %c0_33] : memref<8x1xf32, #tpu.memory_space<vmem>>, vector<8x1xf32>
    tpu.vector_store %arg8[%c0_32, %c0_33], %51 {strides = array<i32>} : memref<8x1xf32, #tpu.memory_space<vmem>>, vector<8x1xf32>,
    %c0_34 = arith.constant 0 : index
    %c0_35 = arith.constant 0 : index
    %53 = vector.load %arg9[%c0_34, %c0_35] : memref<8x1xf32, #tpu.memory_space<vmem>>, vector<8x1xf32>
    %54 = arith.mulf %34, %53 : vector<8x1xf32>
    %c0_36 = arith.constant 0 : index
    %c0_37 = arith.constant 0 : index
    %55 = vector.load %arg5[%c0_36, %c0_37] : memref<8x1xf32, #tpu.memory_space<vmem>>, vector<8x1xf32>
    %56 = arith.subf %24, %55 : vector<8x1xf32>
    %57 = arith.mulf %56, %42 : vector<8x1xf32>
    %58 = arith.subf %54, %57 : vector<8x1xf32>
    %59 = vector.broadcast %24 : vector<8x1xf32> to vector<8x128xf32>
    %60 = arith.subf %7, %59 : vector<8x128xf32>
    %61 = arith.mulf %40, %60 : vector<8x128xf32>
    %cst_38 = arith.constant dense<0.000000e+00> : vector<8xf32>
    %62 = vector.multi_reduction <add>, %61, %cst_38 [1] : vector<8x128xf32> to vector<8xf32>
    %63 = vector.shape_cast %62 : vector<8xf32> to vector<8x1xf32>
    %64 = arith.addf %58, %63 : vector<8x1xf32>
    %c0_39 = arith.constant 0 : index
    %c0_40 = arith.constant 0 : index
    %65 = vector.load %arg9[%c0_39, %c0_40] : memref<8x1xf32, #tpu.memory_space<vmem>>, vector<8x1xf32>
    tpu.vector_store %arg9[%c0_39, %c0_40], %64 {strides = array<i32>} : memref<8x1xf32, #tpu.memory_space<vmem>>, vector<8x1xf32>,
    %c0_41 = arith.constant 0 : index
    %c0_42 = arith.constant 0 : index
    %66 = vector.load %arg5[%c0_41, %c0_42] : memref<8x1xf32, #tpu.memory_space<vmem>>, vector<8x1xf32>
    tpu.vector_store %arg5[%c0_41, %c0_42], %24 {strides = array<i32>} : memref<8x1xf32, #tpu.memory_space<vmem>>, vector<8x1xf32>,
    %c0_43 = arith.constant 0 : index
    %c0_44 = arith.constant 0 : index
    %67 = vector.load %arg7[%c0_43, %c0_44] : memref<8x1xf32, #tpu.memory_space<vmem>>, vector<8x1xf32>
    tpu.vector_store %arg7[%c0_43, %c0_44], %28 {strides = array<i32>} : memref<8x1xf32, #tpu.memory_space<vmem>>, vector<8x1xf32>,
    %c1_i32 = arith.constant 1 : i32
    %68 = arith.cmpi eq, %arg1, %c1_i32 : i32
    %69 = arith.extui %68 : i1 to i32
    %c0_i32_45 = arith.constant 0 : i32
    %70 = arith.cmpi ne, %69, %c0_i32_45 : i32
    scf.if %70 {
      %c0_46 = arith.constant 0 : index
      %c0_47 = arith.constant 0 : index
      %71 = vector.load %arg6[%c0_46, %c0_47] : memref<8x1xf32, #tpu.memory_space<vmem>>, vector<8x1xf32>
      %72 = math.log %71 : vector<8x1xf32>
      %c0_48 = arith.constant 0 : index
      %c0_49 = arith.constant 0 : index
      %73 = vector.load %arg9[%c0_48, %c0_49] : memref<8x1xf32, #tpu.memory_space<vmem>>, vector<8x1xf32>
      %c0_50 = arith.constant 0 : index
      %c0_51 = arith.constant 0 : index
      %74 = vector.load %arg8[%c0_50, %c0_51] : memref<8x1xf32, #tpu.memory_space<vmem>>, vector<8x1xf32>
      %75 = tpu.reciprocal %74 : vector<8x1xf32> -> vector<8x1xf32>
      %76 = arith.mulf %73, %75 : vector<8x1xf32>
      %77 = arith.subf %72, %76 : vector<8x1xf32>
      %78 = vector.shape_cast %77 : vector<8x1xf32> to vector<1x8x1xf32>
      %cst_52 = arith.constant dense<0.000000e+00> : vector<1xf32>
      %79 = vector.multi_reduction <add>, %78, %cst_52 [1, 2] : vector<1x8x1xf32> to vector<1xf32>
      %80 = vector.shape_cast %79 : vector<1xf32> to vector<1x1x1xf32>
      %81 = vector.extract %80[0, 0, 0] : f32 from vector<1x1x1xf32>
      %cst_53 = arith.constant 1.250000e-01 : f32
      %82 = arith.mulf %81, %cst_53 : f32
      %cst_54 = arith.constant 1.000000e+00 : f32
      %83 = vector.broadcast %cst_54 : f32 to vector<1x8x128xf32>
      %84 = vector.broadcast %82 : f32 to vector<1x8x128xf32>
      %85 = arith.mulf %84, %83 : vector<1x8x128xf32>
      %c0_55 = arith.constant 0 : index
      %c0_56 = arith.constant 0 : index
      %c0_57 = arith.constant 0 : index
      %86 = vector.load %arg4[%c0_55, %c0_56, %c0_57] : memref<1x8x128xf32, #tpu.memory_space<vmem>>, vector<1x8x128xf32>
      tpu.vector_store %arg4[%c0_55, %c0_56, %c0_57], %85 {strides = array<i32>} : memref<1x8x128xf32, #tpu.memory_space<vmem>>, vector<1x8x128xf32>,
    } else {
    }
    return
  }
  func.func @transform_0(%arg0: i32, %arg1: i32) -> (i32, i32, i32) {
    %c0_i32 = arith.constant 0 : i32
    %c0_i32_0 = arith.constant 0 : i32
    return %arg0, %c0_i32, %arg1 : i32, i32, i32
  }
  func.func @transform_1(%arg0: i32, %arg1: i32) -> (i32, i32, i32, i32) {
    %c2_i32 = arith.constant 2 : i32
    %0 = arith.addi %c2_i32, %arg0 : i32
    %c0_i32 = arith.constant 0 : i32
    %c0_i32_0 = arith.constant 0 : i32
    %c0_i32_1 = arith.constant 0 : i32
    return %c0_i32, %0, %c0_i32_0, %arg1 : i32, i32, i32, i32
  }
  func.func @transform_2(%arg0: i32, %arg1: i32) -> (i32, i32, i32) {
    %c0_i32 = arith.constant 0 : i32
    %c0_i32_0 = arith.constant 0 : i32
    %c0_i32_1 = arith.constant 0 : i32
    return %arg0, %c0_i32, %c0_i32_0 : i32, i32, i32
  }
}

</mosaic_0001>

<llo_original>
// kernel: tpu_custom_call.1
$region0: #{tpu_custom_call.1}
  #allocation0 [shape = 'u32[]', space=smem, size = 0x4, offset = 0x4, fixed_abs, tag = 'smem constant byte address 0x4 - core index']
  #allocation1 [shape = 'u32[144,128]{1,0:T(1,128)}', space=vmem, size = 0x12000, scoped, tag = 'internal scratch']
  #allocation2 [shape = 'f32[8,1]{1,0:T(8,128)}', space=vmem, size = 0x1000, scoped, tag = 'scratch operand']
  #allocation3 [shape = 'f32[8,1]{1,0:T(8,128)}', space=vmem, size = 0x1000, scoped, tag = 'scratch operand']
  #allocation4 [shape = 'f32[8,1]{1,0:T(8,128)}', space=vmem, size = 0x1000, scoped, tag = 'scratch operand']
  #allocation5 [shape = 'f32[8,1]{1,0:T(8,128)}', space=vmem, size = 0x1000, scoped, tag = 'scratch operand']
  #allocation6 [shape = 'f32[8,1]{1,0:T(8,128)}', space=vmem, size = 0x1000, scoped, tag = 'scratch operand']
  %s0 = inlined_call_operand.hbm [shape: bf16[2,8,256], index: 0, kind: input, shape index: {}]
  %s1 = inlined_call_operand.hbm [shape: bf16[3,4,8,256], index: 1, kind: input, shape index: {}]
  %s2 = inlined_call_operand.hbm [shape: f32[2,8,128], index: 2, kind: output, shape index: {}]
  %s3 = sld [smem:[#allocation0]]
  $region57: #{tpu_custom_call.1} parent=0
    _
  %s5 = ssub.s32 1, %s3
  %s6 = scalar_select 0, %s5, %s3
  $region1: #{tpu_custom_call.1} parent=0
    #allocation7 [shape = 'u8[4096]{0}', space=vmem, size = 0x1000, scoped, tag = 'input window, operand 0']
    #allocation8 [shape = 's32[2]{0}', space=sflag, size = 0x8, scoped, tag = 'scoped memory for tpu_custom_call.1']
    #allocation9 [shape = 's32[2]{0}', space=sflag, size = 0x8, scoped, tag = 'scoped memory for tpu_custom_call.1']
    #allocation10 [shape = 'u8[12288]{0}', space=vmem, size = 0x3000, scoped, tag = 'input window, operand 1']
    #allocation11 [shape = 's32[2]{0}', space=sflag, size = 0x8, scoped, tag = 'scoped memory for tpu_custom_call.1']
    #allocation12 [shape = 'u8[8192]{0}', space=vmem, size = 0x2000, scoped, tag = 'output window, operand 0']
    %7 = vsyncpa [#allocation8], 0
    %s8 = scalar_lea.sflag [#allocation8], 1
    %9 = vsyncpa %s8, 0
    %10 = vsyncpa [#allocation11], 0
    %s11 = scalar_lea.sflag [#allocation11], 1
    %12 = vsyncpa %s11, 0
    %13 = vsyncpa [#allocation9], 0
    %s14 = scalar_lea.sflag [#allocation9], 1
    %15 = vsyncpa %s14, 0
    loop: start=0, step=1, limit=6
    $region2: #{tpu_custom_call.1} parent=1 // loop_pre_header
      _
    $region3: #{tpu_custom_call.1} parent=1 // loop_header
      %s17 = sphi 0, %s21
      %p18 = scmp.ge.s32.totalorder %s17, 6
      %s24 = sphi 0, %s36
      %s25 = sphi 0, %s32
      %s26 = sphi 0, %s24
      %s27 = sphi 0, %s25
      %s28 = sphi 0, %s26
      %s29 = sphi 0, %s27
      %s41 = sphi 0, %s43
      %s44 = sphi 0, %s41
      %s45 = sphi 0, %s44
      %s61 = sphi 0, %s45
      %s71 = sphi 0, %s73
      %s74 = sphi 0, %s71
      %s75 = sphi 0, %s74
      %s91 = sphi 0, %s75
      %s97 = sphi 0, %s99
      %s100 = sphi 0, %s97
      %s101 = sphi 0, %s100
      %s117 = sphi 0, %s101
    $region4: #{tpu_custom_call.1} parent=1 // loop_header_branch
      %20 = sbr.rel (%p18) target = $region8
    $region5: #{tpu_custom_call.1} parent=1 // loop_body
      %s22 = ssub.s32 %s17, 1
      %s23 = ssub.s32 %s17, 2
      %s30 = sadd.s32 1, %s25
      %p31 = scmp.ge.s32.totalorder %s30, 2
      %s32 = scalar_select %p31, 0, %s30
      %s33 = sadd.s32 1, %s24
      %s34 = scalar_select %p31, %s33, %s24
      %p35 = scmp.ge.s32.totalorder %s34, 2
      %s36 = scalar_select %p35, 0, %s34
      %s37 = ssub.s32 %s24, %s36
      %s38 = ssub.s32 %s25, %s32
      %s39 = sor.u32 %s37, %s38
      %p40 = scmp.eq.s32.totalorder %s39, 0
      %s42 = sadd.s32 %s41, 1
      %s43 = scalar_select %p40, %s41, %s42
      %p46 = pneg %p40
      %p47 = scmp.eq.s32.totalorder %s17, 3
      %p48 = por %p46, %p47
      %p49 = scmp.ne.s32.totalorder %s41, %s44
      %p50 = scmp.eq.s32.totalorder %s17, 0
      %p51 = por %p49, %p50
      %p52 = scmp.ne.s32.totalorder %s41, %s44
      %p53 = scmp.eq.s32.totalorder %s22, 3
      %p54 = por %p52, %p53
      %p55 = scmp.ne.s32.totalorder %s44, %s45
      %p56 = scmp.eq.s32.totalorder %s22, 0
      %p57 = por %p55, %p56
      %p58 = scmp.ne.s32.totalorder %s44, %s45
      %p59 = scmp.eq.s32.totalorder %s23, 3
      %p60 = por %p58, %p59
      %p62 = scmp.ne.s32.totalorder %s45, %s61
      %p63 = scmp.eq.s32.totalorder %s23, 0
      %p64 = por %p62, %p63
      %s65 = sadd.s32 %s24, 2
      %s66 = sadd.s32 %s36, 2
      %s67 = ssub.s32 %s65, %s66
      %s68 = ssub.s32 %s25, %s32
      %s69 = sor.u32 %s67, %s68
      %p70 = scmp.eq.s32.totalorder %s69, 0
      %s72 = sadd.s32 %s71, 1
      %s73 = scalar_select %p70, %s71, %s72
      %p76 = pneg %p70
      %p77 = scmp.eq.s32.totalorder %s17, 3
      %p78 = por %p76, %p77
      %p79 = scmp.ne.s32.totalorder %s71, %s74
      %p80 = scmp.eq.s32.totalorder %s17, 0
      %p81 = por %p79, %p80
      %p82 = scmp.ne.s32.totalorder %s71, %s74
      %p83 = scmp.eq.s32.totalorder %s22, 3
      %p84 = por %p82, %p83
      %p85 = scmp.ne.s32.totalorder %s74, %s75
      %p86 = scmp.eq.s32.totalorder %s22, 0
      %p87 = por %p85, %p86
      %p88 = scmp.ne.s32.totalorder %s74, %s75
      %p89 = scmp.eq.s32.totalorder %s23, 3
      %p90 = por %p88, %p89
      %p92 = scmp.ne.s32.totalorder %s75, %s91
      %p93 = scmp.eq.s32.totalorder %s23, 0
      %p94 = por %p92, %p93
      %s95 = ssub.s32 %s24, %s36
      %p96 = scmp.eq.s32.totalorder %s95, 0
      %s98 = sadd.s32 %s97, 1
      %s99 = scalar_select %p96, %s97, %s98
      %p102 = pneg %p96
      %p103 = scmp.eq.s32.totalorder %s17, 3
      %p104 = por %p102, %p103
      %p105 = scmp.ne.s32.totalorder %s97, %s100
      %p106 = scmp.eq.s32.totalorder %s17, 0
      %p107 = por %p105, %p106
      %p108 = scmp.ne.s32.totalorder %s97, %s100
      %p109 = scmp.eq.s32.totalorder %s22, 3
      %p110 = por %p108, %p109
      %p111 = scmp.ne.s32.totalorder %s100, %s101
      %p112 = scmp.eq.s32.totalorder %s22, 0
      %p113 = por %p111, %p112
      %p114 = scmp.ne.s32.totalorder %s100, %s101
      %p115 = scmp.eq.s32.totalorder %s23, 3
      %p116 = por %p114, %p115
      %p118 = scmp.ne.s32.totalorder %s101, %s117
      %p119 = scmp.eq.s32.totalorder %s23, 0
      %p120 = por %p118, %p119
      %p121 = scmp.le.s32.totalorder 1, %s17
      %p122 = scmp.lt.s32.totalorder %s17, 5
      %p123 = pnand %p121, %p122
      %p124 = pneg %p123
      // Predicated region
      $region9: #{tpu_custom_call.1} parent=5 // pred_check
        _
      $region10: #{tpu_custom_call.1} parent=5 // pred_check_branch
        %126 = sbr.rel (%p123) target = $region12
      $region11: #{tpu_custom_call.1} parent=5 // pred_region
        %s127 = ssub.s32 %s17, 1
      $region12: #{tpu_custom_call.1} parent=5 // pred_fallthru
        _
      %p128 = scmp.lt.s32.totalorder %s17, 4
      // Predicated region
      $region13: #{tpu_custom_call.1} parent=5 // pred_check
        %p129 = pneg %p128
      $region14: #{tpu_custom_call.1} parent=5 // pred_check_branch
        %131 = sbr.rel (%p129) target = $region16
      $region15: #{tpu_custom_call.1} parent=5 // pred_region
        // Predicated region
        $region17: #{tpu_custom_call.1} parent=15 // pred_check
          %p132 = pneg %p51
        $region18: #{tpu_custom_call.1} parent=15 // pred_check_branch
          %134 = sbr.rel (%p132) target = $region20
        $region19: #{tpu_custom_call.1} parent=15 // pred_region
          %s135 = sand.u32 %s41, 1
          %s136 = scalar_lea.sflag [#allocation8], %s135
          %s137 = sand.u32 %s41, 1
          %s138 = smul.addr %s137, 4
          %s139 = scalar_lea.vmem [#allocation7], %s138
          %s141 = ssub.s32 64, 64
          %142 = vsyncadd %s136, %s141
          %s143 = smul.addr %s24, 2
          %s144 = sadd.s32 %s25, %s143
          %s145 = smul.addr %s144, 64
          %s146 = scalar_lea.hbm %s0, %s145
          %s148 = sshll.u32 %s139, 4
          %s149 = int_to_ptr.vmem [resolvable:$true] %s148
          %151 = dma.hbm_to_vmem [thread:$0]  %s146, 64, %s149, %s136
        $region20: #{tpu_custom_call.1} parent=15 // pred_fallthru
          _
        // Predicated region
        $region21: #{tpu_custom_call.1} parent=15 // pred_check
          %p152 = pneg %p81
        $region22: #{tpu_custom_call.1} parent=15 // pred_check_branch
          %154 = sbr.rel (%p152) target = $region24
        $region23: #{tpu_custom_call.1} parent=15 // pred_region
          %s155 = sand.u32 %s71, 1
          %s156 = scalar_lea.sflag [#allocation11], %s155
          %s157 = sand.u32 %s71, 1
          %s158 = smul.addr %s157, 12
          %s159 = scalar_lea.vmem [#allocation10], %s158
          %s160 = sadd.s32 %s24, 2
          %s162 = ssub.s32 192, 192
          %163 = vsyncadd %s156, %s162
          %s164 = smul.addr %s160, 2
          %s165 = sadd.s32 %s25, %s164
          %s166 = smul.addr %s165, 64
          %s167 = scalar_lea.hbm %s1, %s166
          %s168 = sshll.u32 %s159, 4
          %s169 = int_to_ptr.vmem [resolvable:$true] %s168
          %174 = dma.hbm_to_vmem [thread:$0]  %s167, 192, %s169, %s156, 512, 64, 4
        $region24: #{tpu_custom_call.1} parent=15 // pred_fallthru
          _
      $region16: #{tpu_custom_call.1} parent=5 // pred_fallthru
        _
      %p175 = scmp.le.s32.totalorder 1, %s17
      %p176 = scmp.lt.s32.totalorder %s17, 5
      %p177 = pnand %p175, %p176
      %p178 = pneg %p177
      // Predicated region
      $region25: #{tpu_custom_call.1} parent=5 // pred_check
        _
      $region26: #{tpu_custom_call.1} parent=5 // pred_check_branch
        %180 = sbr.rel (%p177) target = $region28
      $region27: #{tpu_custom_call.1} parent=5 // pred_region
        %s181 = ssub.s32 %s17, 1
        %s182 = sand.u32 %s44, 1
        %s183 = scalar_lea.sflag [#allocation8], %s182
        %s184 = sand.u32 %s44, 1
        %s185 = smul.addr %s184, 4
        %s186 = scalar_lea.vmem [#allocation7], %s185
        // Predicated region
        $region29: #{tpu_custom_call.1} parent=27 // pred_check
          %p187 = pneg %p57
        $region30: #{tpu_custom_call.1} parent=27 // pred_check_branch
          %189 = sbr.rel (%p187) target = $region32
        $region31: #{tpu_custom_call.1} parent=27 // pred_region
          %190 = dma.done %s183, 64
        $region32: #{tpu_custom_call.1} parent=27 // pred_fallthru
          _
        %s191 = sand.u32 %s74, 1
        %s192 = scalar_lea.sflag [#allocation11], %s191
        %s193 = sand.u32 %s74, 1
        %s194 = smul.addr %s193, 12
        %s195 = scalar_lea.vmem [#allocation10], %s194
        // Predicated region
        $region33: #{tpu_custom_call.1} parent=27 // pred_check
          %p196 = pneg %p87
        $region34: #{tpu_custom_call.1} parent=27 // pred_check_branch
          %198 = sbr.rel (%p196) target = $region36
        $region35: #{tpu_custom_call.1} parent=27 // pred_region
          %199 = dma.done %s192, 192
        $region36: #{tpu_custom_call.1} parent=27 // pred_fallthru
          _
        %s200 = sand.u32 %s44, 1
        %s201 = scalar_lea.sflag [#allocation8], %s200
        %s202 = sand.u32 %s44, 1
        %s203 = smul.addr %s202, 4
        %s204 = scalar_lea.vmem [#allocation7], %s203
        %p205 = pneg %p57
        %p206 = pneg %p54
        %s207 = sand.u32 %s74, 1
        %s208 = scalar_lea.sflag [#allocation11], %s207
        %s209 = sand.u32 %s74, 1
        %s210 = smul.addr %s209, 12
        %s211 = scalar_lea.vmem [#allocation10], %s210
        %p212 = pneg %p87
        %p213 = pneg %p84
        %p214 = pneg %p113
        %p215 = pneg %p110
        %s216 = sand.u32 %s100, 1
        %s217 = scalar_lea.sflag [#allocation9], %s216
        %s218 = sand.u32 %s100, 1
        %s219 = smul.addr %s218, 8
        %s220 = scalar_lea.vmem [#allocation12], %s219
        %s221 = sadd.s32 %s26, 2
        %p222 = scmp.eq.s32.totalorder %s27, 0
        // Predicated region
        $region37: #{tpu_custom_call.1} parent=27 // pred_check
          %p223 = pneg %p222
        $region38: #{tpu_custom_call.1} parent=27 // pred_check_branch
          %225 = sbr.rel (%p223) target = $region40
        $region39: #{tpu_custom_call.1} parent=27 // pred_region
          %vm226 = vcmask 7168
          %227 = vst.msk [vmem:[#allocation2] sm:$0xff] %vm226, -1e+30
          %228 = vst.msk [vmem:[#allocation4] sm:$0xff] %vm226, -1e+30
          %229 = vst.msk [vmem:[#allocation3] sm:$0xff] %vm226, 0.0
          %230 = vst.msk [vmem:[#allocation5] sm:$0xff] %vm226, 0.0
          %231 = vst.msk [vmem:[#allocation6] sm:$0xff] %vm226, 0.0
        $region40: #{tpu_custom_call.1} parent=27 // pred_fallthru
          _
        %v232 = vld [vmem:[%s186] sm:$0xf]
        %v233 = vunpack.c.l.bf16 %v232
        %v234 = vmul.f32 %v233, 0.25
        %v235 = vld [vmem:[%s195] sm:$0xf]
        %v236 = vunpack.c.l.bf16 %v235
        %s237 = scalar_lea.vmem %s195, 4 [#allocation10]
        %v238 = vld [vmem:[%s237] sm:$0xf]
        %v239 = vunpack.c.l.bf16 %v238
        %v240 = vadd.f32 %v236, %v239
        %s241 = scalar_lea.vmem %s195, 8 [#allocation10]
        %v242 = vld [vmem:[%s241] sm:$0xf]
        %v243 = vunpack.c.l.bf16 %v242
        %v244 = vadd.f32 %v240, %v243
        %v245 = vmul.f32 %v244, 0.25
        %v246 = vld [vmem:[#allocation2] sm:$0xff]
        %247 = vmax.xlane.f32.xlu0 %v234
        %v248 = vpop.xlane.xlu0 %247
        %v249 = vmax.f32 %v246, %v248
        %v250 = vld [vmem:[#allocation4] sm:$0xff]
        %251 = vmax.xlane.f32.xlu0 %v245
        %v252 = vpop.xlane.xlu0 %251
        %v253 = vmax.f32 %v250, %v252
        %v254 = vsub.f32 %v246, %v249
        %v255 = vmul.f32 %v254, 1.442695
        %v256 = vpow.pop %v255
        %v257 = vsub.f32 %v250, %v253
        %v258 = vmul.f32 %v257, 1.442695
        %v259 = vpow.pop %v258
        %261 = vset.pattern.permute.xlu0 0
        %262 = vperm.xlu0 %261, %v249
        %v263 = vpop.permute.xlu0 %262
        %v265 = vsub.f32 %v234, %v263
        %v266 = vmul.f32 %v265, 1.442695
        %v267 = vpow.pop %v266
        %269 = vset.pattern.permute.xlu0 0
        %270 = vperm.xlu0 %269, %v253
        %v271 = vpop.permute.xlu0 %270
        %v273 = vsub.f32 %v245, %v271
        %v274 = vmul.f32 %v273, 1.442695
        %v275 = vpow.pop %v274
        %v276 = vld [vmem:[#allocation5] sm:$0xff]
        %v277 = vmul.f32 %v259, %v276
        %v278 = vld [vmem:[#allocation3] sm:$0xff]
        %v279 = vmul.f32 %v256, %v278
        %280 = vadd.xlane.f32.xlu0 %v267
        %v281 = vpop.xlane.xlu0 %280
        %v282 = vadd.f32 %v279, %v281
        %vm283 = vcmask 7168
        %284 = vst.msk [vmem:[#allocation3] sm:$0xff] %vm283, %v282
        %285 = vadd.xlane.f32.xlu0 %v275
        %v286 = vpop.xlane.xlu0 %285
        %v287 = vadd.f32 %v277, %v286
        %288 = vst.msk [vmem:[#allocation5] sm:$0xff] %vm283, %v287
        %v289 = vld [vmem:[#allocation6] sm:$0xff]
        %v290 = vmul.f32 %v259, %v289
        %v291 = vld [vmem:[#allocation2] sm:$0xff]
        %v292 = vsub.f32 %v249, %v291
        %v293 = vmul.f32 %v292, %v277
        %v294 = vsub.f32 %v290, %v293
        %v295 = vmul.f32 %v275, %v265
        %296 = vadd.xlane.f32.xlu0 %v295
        %v297 = vpop.xlane.xlu0 %296
        %v298 = vadd.f32 %v294, %v297
        %299 = vst.msk [vmem:[#allocation6] sm:$0xff] %vm283, %v298
        %300 = vst.msk [vmem:[#allocation2] sm:$0xff] %vm283, %v249
        %301 = vst.msk [vmem:[#allocation4] sm:$0xff] %vm283, %v253
        %p302 = scmp.eq.s32.totalorder %s27, 1
        // Predicated region
        $region41: #{tpu_custom_call.1} parent=27 // pred_check
          %p303 = pneg %p302
        $region42: #{tpu_custom_call.1} parent=27 // pred_check_branch
          %305 = sbr.rel (%p303) target = $region44
        $region43: #{tpu_custom_call.1} parent=27 // pred_region
          %v306 = vld [vmem:[#allocation3] sm:$0xff]
          %v307 = vlog2.pop %v306
          %v308 = vmul.f32 %v307, 0.6931472
          %v309 = vld [vmem:[#allocation6] sm:$0xff]
          %v310 = vld [vmem:[#allocation5] sm:$0xff]
          %v311 = vrcp.pop %v310
          %v312 = vmul.f32 %v309, %v311
          %v313 = vsub.f32 %v308, %v312
          %v314 = vsel %vm283, %v313, 0.0
          %315 = vadd.xlane.f32.xlu0 %v314
          %v316 = vpop.xlane.xlu0 %315
          %v317 = vrot.slane %v316, 4
          %v318 = vadd.f32 %v316, %v317
          %v319 = vrot.slane %v318, 2
          %v320 = vadd.f32 %v318, %v319
          %v321 = vrot.slane %v320, 1
          %v322 = vadd.f32 %v320, %v321
          %s323 = vtos %v322
          %s324 = smul.f32 %s323, 0.125
          %v325 = vstv %s324
          %326 = vst [vmem:[%s220] sm:$0xff] %v325
        $region44: #{tpu_custom_call.1} parent=27 // pred_fallthru
          _
        %s327 = sand.u32 %s100, 1
        %s328 = scalar_lea.sflag [#allocation9], %s327
        %s329 = sand.u32 %s100, 1
        %s330 = smul.addr %s329, 8
        %s331 = scalar_lea.vmem [#allocation12], %s330
        // Predicated region
        $region45: #{tpu_custom_call.1} parent=27 // pred_check
          %p332 = pneg %p110
        $region46: #{tpu_custom_call.1} parent=27 // pred_check_branch
          %334 = sbr.rel (%p332) target = $region48
        $region47: #{tpu_custom_call.1} parent=27 // pred_region
          %s336 = ssub.s32 128, 128
          %337 = vsyncadd %s328, %s336
          %s338 = smul.addr %s26, 128
          %s339 = scalar_lea.hbm %s2, %s338
          %s341 = sshll.u32 %s331, 4
          %s342 = int_to_ptr.vmem [resolvable:$true] %s341
          %344 = dma.vmem_to_hbm [thread:$0]  %s342, 128, %s339, %s328
        $region48: #{tpu_custom_call.1} parent=27 // pred_fallthru
          _
      $region28: #{tpu_custom_call.1} parent=5 // pred_fallthru
        _
      %p345 = scmp.le.s32.totalorder 2, %s17
      // Predicated region
      $region49: #{tpu_custom_call.1} parent=5 // pred_check
        %p346 = pneg %p345
      $region50: #{tpu_custom_call.1} parent=5 // pred_check_branch
        %348 = sbr.rel (%p346) target = $region52
      $region51: #{tpu_custom_call.1} parent=5 // pred_region
        %s349 = ssub.s32 %s17, 2
        // Predicated region
        $region53: #{tpu_custom_call.1} parent=51 // pred_check
          %p350 = pneg %p116
        $region54: #{tpu_custom_call.1} parent=51 // pred_check_branch
          %352 = sbr.rel (%p350) target = $region56
        $region55: #{tpu_custom_call.1} parent=51 // pred_region
          %s353 = sand.u32 %s101, 1
          %s354 = scalar_lea.sflag [#allocation9], %s353
          %s355 = sand.u32 %s101, 1
          %s356 = smul.addr %s355, 8
          %s357 = scalar_lea.vmem [#allocation12], %s356
          %358 = dma.done %s354, 128
        $region56: #{tpu_custom_call.1} parent=51 // pred_fallthru
          _
      $region52: #{tpu_custom_call.1} parent=5 // pred_fallthru
        _
    $region6: #{tpu_custom_call.1} parent=1 // loop_footer
      %s21 = sadd.s32 1, %s17
    $region7: #{tpu_custom_call.1} parent=1 // loop_footer_branch
      %16 = sbr.rel target = $region3
    $region8: #{tpu_custom_call.1} parent=1 // loop_exit
      _
    %359 = vsyncpa [#allocation8], 1
    %s360 = scalar_lea.sflag [#allocation8], 1
    %361 = vsyncpa %s360, 1
    %362 = vsyncpa [#allocation11], 1
    %s363 = scalar_lea.sflag [#allocation11], 1
    %364 = vsyncpa %s363, 1
    %365 = vsyncpa [#allocation9], 1
    %s366 = scalar_lea.sflag [#allocation9], 1
    %367 = vsyncpa %s366, 1

</llo_original>
